<compile_context>
chip_gen: v6e
topology: v6e:2x2x1
jax: 0.10.0
libtpu: 0.0.40
codegen_flags: <defaults>
</compile_context>

<pallas_src>
import jax
import jax.numpy as jnp
from jax.experimental import pallas as pl
from jax.experimental.pallas import tpu as pltpu


def _round_up(n, m):
    return ((n + m - 1) // m) * m


def _make_mlp_kernel(num_layers):
    """Build a fused MLP kernel for `num_layers` Linear layers (ReLU between them).

    Ref order: x, (W_0, b_0), ..., (W_{n-1}, b_{n-1}), out
      x    : (batch_tile, d_in)                     VMEM
      W_l  : (out_l, in_l)   PyTorch layout         VMEM (resident)
      b_l  : (out_l, 1) column for hidden layers    VMEM (resident)
             (1,) scalar for the final layer        SMEM
      out  : (1, 1, batch_tile)                     VMEM (lane-dense row)
    """

    def kernel(*refs):
        x_ref = refs[0]
        o_ref = refs[-1]
        # Batch -> lanes: one XLU transpose, then every matmul is (feat, feat)@(feat, tile).
        h = x_ref[...].astype(jnp.float32).T                      # (d_in, tile)
        for l in range(num_layers):
            w_ref = refs[1 + 2 * l]
            b_ref = refs[2 + 2 * l]
            z = jnp.dot(w_ref[...], h, preferred_element_type=jnp.float32)
            if l == num_layers - 1:
                z = z + b_ref[0]                                  # SMEM scalar bias
            else:
                z = jnp.maximum(z + b_ref[...], 0.0)              # (out_l,1) column bias + ReLU
            h = z
        o_ref[0] = h.astype(o_ref.dtype)                          # (1, batch_tile) lane-dense

    return kernel


def regression_nn_forward(x, params, *, batch_tile=None, x_dtype=jnp.bfloat16):
    """Fused MLP forward.

    x:       (B, inputSize) float32
    params:  tuple of (W, b) in PyTorch nn.Linear layout: W (out, in), b (out,);
             the last layer must have out == 1.
    returns: (B, 1) float32
    """
    B, d_in = x.shape
    num_layers = len(params)
    out_dtype = jnp.float32

    # ---- batch tiling -------------------------------------------------------
    B8 = _round_up(B, 8)
    if batch_tile is None:
        if B8 <= 4096:
            batch_tile = B8                                   # single grid step
        else:
            # >= 2 steps (v7x megacore sharding + DMA/compute overlap),
            # capped at 8192 rows/step; lane-aligned for unmasked stores.
            batch_tile = _round_up(min(8192, pl.cdiv(B8, 2)), 128)
    else:
        batch_tile = max(8, _round_up(batch_tile, 8))
    num_tiles = pl.cdiv(B8, batch_tile)

    # Halve the dominant HBM read traffic (weights are tiny); math stays f32 in-kernel.
    x = x.astype(x_dtype)
    # Pad only to the 8-row sublane granularity (cheap / usually a no-op); the ragged
    # last grid block is handled by Pallas masking — no full-tile jnp.pad copy.
    if B8 != B:
        x = jnp.pad(x, ((0, B8 - B), (0, 0)))

    # ---- specs & operands ---------------------------------------------------
    full = lambda shape: pl.BlockSpec(shape, lambda i: (0, 0))   # grid-invariant -> resident

    in_specs = [pl.BlockSpec((batch_tile, d_in), lambda i: (i, 0))]
    operands = [x]
    for li, (w, b) in enumerate(params):
        in_specs.append(full(w.shape))
        operands.append(w)
        if li == num_layers - 1:
            in_specs.append(pl.BlockSpec(memory_space=pltpu.MemorySpace.SMEM))
            operands.append(b.reshape(1))                        # scalar output bias
        else:
            b_col = b.reshape(-1, 1)                             # (out_l, 1) column
            in_specs.append(full(b_col.shape))
            operands.append(b_col)

    flops = 2 * B * sum(int(w.shape[0]) * int(w.shape[1]) for w, _ in params)
    bytes_accessed = int(
        B8 * d_in * jnp.dtype(x_dtype).itemsize
        + num_tiles * batch_tile * jnp.dtype(out_dtype).itemsize
        + sum(w.size * w.dtype.itemsize + b.size * b.dtype.itemsize for w, b in params)
    )

    out = pl.pallas_call(
        _make_mlp_kernel(num_layers),
        out_shape=jax.ShapeDtypeStruct((num_tiles, 1, batch_tile), out_dtype),
        grid_spec=pl.GridSpec(
            grid=(num_tiles,),
            in_specs=in_specs,
            out_specs=pl.BlockSpec((1, 1, batch_tile), lambda i: (i, 0, 0)),
        ),
        compiler_params=pltpu.CompilerParams(
            dimension_semantics=("parallel",),   # shards batch tiles across v7x TCs
        ),
        cost_estimate=pl.CostEstimate(
            flops=flops, transcendentals=0, bytes_accessed=bytes_accessed
        ),
    )(*operands)

    # (num_tiles, 1, batch_tile) -> (B, 1); padded / masked tail rows are dropped here.
    return out.reshape(num_tiles * batch_tile, 1)[:B]


def init_params(key, input_size, layer_sizes):
    """Deterministic init mimicking PyTorch nn.Linear default (U(-1/sqrt(fan_in), +)).

    Returns params in PyTorch layout: W (out, in), b (out,).
    """
    sizes = [input_size] + list(layer_sizes) + [1]
    params = []
    for fan_in, fan_out in zip(sizes[:-1], sizes[1:]):
        key, kw, kb = jax.random.split(key, 3)
        bound = 1.0 / jnp.sqrt(fan_in)
        w = jax.random.uniform(kw, (fan_out, fan_in), jnp.float32, -bound, bound)
        b = jax.random.uniform(kb, (fan_out,), jnp.float32, -bound, bound)
        params.append((w, b))
    return tuple(params)


def reference_forward(x, params):
    """Pure-JAX reference of the same forward pass (PyTorch-layout params)."""
    h = x
    for i, (w, b) in enumerate(params):
        h = h @ w.T + b
        if i < len(params) - 1:
            h = jnp.maximum(h, 0.0)
    return h


if __name__ == "__main__":
    # RegressionNN(inputSize=32, layerSizes=[32, 16])
    input_size = 32
    layer_sizes = [32, 16]

    key = jax.random.PRNGKey(0)
    key, kx = jax.random.split(key)
    params = init_params(key, input_size, layer_sizes)

    # Case 1: tiny batch, f32 inputs -> matches the f32 PyTorch/pure-JAX forward.
    batch = 16
    x = jax.random.normal(kx, (batch, input_size), jnp.float32)
    out = jax.block_until_ready(regression_nn_forward(x, params, x_dtype=jnp.float32))
    ref = reference_forward(x, params)
    assert out.shape == (batch, 1)
    assert jnp.allclose(out, ref, atol=1e-5, rtol=1e-5), "f32 path mismatch vs reference"

    # Case 2: batch not a multiple of 8, default bf16 input cast (ragged block, no pad copy).
    batch2 = 13
    x2 = jax.random.normal(jax.random.PRNGKey(42), (batch2, input_size), jnp.float32)
    out2 = jax.block_until_ready(regression_nn_forward(x2, params))
    ref2_q = reference_forward(x2.astype(jnp.bfloat16).astype(jnp.float32), params)
    assert out2.shape == (batch2, 1)
    assert jnp.allclose(out2, ref2_q, atol=1e-4, rtol=1e-4), "bf16 path mismatch vs quantized ref"
    assert jnp.allclose(out2, reference_forward(x2, params), atol=1e-1, rtol=1e-1), \
        "bf16 path deviates too far from f32 reference"

    # Case 3: multi-step grid with a ragged last block (300 rows, 128-row tiles).
    batch3 = 300
    x3 = jax.random.normal(jax.random.PRNGKey(7), (batch3, input_size), jnp.float32)
    out3 = jax.block_until_ready(regression_nn_forward(x3, params, batch_tile=128))
    ref3_q = reference_forward(x3.astype(jnp.bfloat16).astype(jnp.float32), params)
    assert out3.shape == (batch3, 1)
    assert jnp.allclose(out3, ref3_q, atol=1e-4, rtol=1e-4), "multi-tile ragged path mismatch"

    print("KERNEL_OK")
</pallas_src>

<mosaic_0001>
module attributes {stable_mosaic.version = 11 : i64} {
  func.func @kernel(%arg0: i32, %arg1: memref<16x32xf32, #tpu.memory_space<vmem>>, %arg2: memref<32x32xf32, #tpu.memory_space<vmem>>, %arg3: memref<32x1xf32, #tpu.memory_space<vmem>>, %arg4: memref<16x32xf32, #tpu.memory_space<vmem>>, %arg5: memref<16x1xf32, #tpu.memory_space<vmem>>, %arg6: memref<1x16xf32, #tpu.memory_space<vmem>>, %arg7: memref<1xf32, #tpu.memory_space<smem>>, %arg8: memref<1x1x16xf32, #tpu.memory_space<vmem>>) attributes {dimension_semantics = [#tpu.dimension_semantics<parallel>], iteration_bounds = array<i64: 1>, scalar_prefetch = 0 : i64, scratch_operands = 0 : i64, tpu.core_type = #tpu.core_type<tc>, window_params = [{transform_indices = @transform_0, window_bounds = array<i64: 16, 32>}, {pipeline_mode = #tpu.pipeline_mode<synchronous>, transform_indices = @transform_1, window_bounds = array<i64: 32, 32>}, {pipeline_mode = #tpu.pipeline_mode<synchronous>, transform_indices = @transform_2, window_bounds = array<i64: 32, 1>}, {pipeline_mode = #tpu.pipeline_mode<synchronous>, transform_indices = @transform_3, window_bounds = array<i64: 16, 32>}, {pipeline_mode = #tpu.pipeline_mode<synchronous>, transform_indices = @transform_4, window_bounds = array<i64: 16, 1>}, {pipeline_mode = #tpu.pipeline_mode<synchronous>, transform_indices = @transform_5, window_bounds = array<i64: 1, 16>}, {transform_indices = @transform_6, window_bounds = array<i64: 1>}, {transform_indices = @transform_7, window_bounds = array<i64: 1, 1, 16>}]} {
    %c0 = arith.constant 0 : index
    %c0_0 = arith.constant 0 : index
    %0 = vector.load %arg1[%c0, %c0_0] : memref<16x32xf32, #tpu.memory_space<vmem>>, vector<16x32xf32>
    %1 = tpu.transpose %0, [1, 0] : vector<16x32xf32> -> vector<32x16xf32>
    %c0_1 = arith.constant 0 : index
    %c0_2 = arith.constant 0 : index
    %2 = vector.load %arg2[%c0_1, %c0_2] : memref<32x32xf32, #tpu.memory_space<vmem>>, vector<32x32xf32>
    %cst = arith.constant dense<0.000000e+00> : vector<32x16xf32>
    %3 = tpu.matmul %2, %1, %cst {dimension_numbers = #tpu.dot_dimension_numbers<[1], [0], [0], [1], [0, 0, 1, 1], [], []>} : vector<32x32xf32>, vector<32x16xf32>, vector<32x16xf32> -> vector<32x16xf32>
    %c0_3 = arith.constant 0 : index
    %c0_4 = arith.constant 0 : index
    %4 = vector.load %arg3[%c0_3, %c0_4] : memref<32x1xf32, #tpu.memory_space<vmem>>, vector<32x1xf32>
    %5 = vector.broadcast %4 : vector<32x1xf32> to vector<32x16xf32>
    %6 = arith.addf %3, %5 : vector<32x16xf32>
    %cst_5 = arith.constant 0.000000e+00 : f32
    %7 = vector.broadcast %cst_5 : f32 to vector<32x16xf32>
    %8 = arith.maximumf %6, %7 : vector<32x16xf32>
    %c0_6 = arith.constant 0 : index
    %c0_7 = arith.constant 0 : index
    %9 = vector.load %arg4[%c0_6, %c0_7] : memref<16x32xf32, #tpu.memory_space<vmem>>, vector<16x32xf32>
    %cst_8 = arith.constant dense<0.000000e+00> : vector<16x16xf32>
    %10 = tpu.matmul %9, %8, %cst_8 {dimension_numbers = #tpu.dot_dimension_numbers<[1], [0], [0], [1], [0, 0, 1, 1], [], []>} : vector<16x32xf32>, vector<32x16xf32>, vector<16x16xf32> -> vector<16x16xf32>
    %c0_9 = arith.constant 0 : index
    %c0_10 = arith.constant 0 : index
    %11 = vector.load %arg5[%c0_9, %c0_10] : memref<16x1xf32, #tpu.memory_space<vmem>>, vector<16x1xf32>
    %12 = vector.broadcast %11 : vector<16x1xf32> to vector<16x16xf32>
    %13 = arith.addf %10, %12 : vector<16x16xf32>
    %cst_11 = arith.constant 0.000000e+00 : f32
    %14 = vector.broadcast %cst_11 : f32 to vector<16x16xf32>
    %15 = arith.maximumf %13, %14 : vector<16x16xf32>
    %c0_12 = arith.constant 0 : index
    %c0_13 = arith.constant 0 : index
    %16 = vector.load %arg6[%c0_12, %c0_13] : memref<1x16xf32, #tpu.memory_space<vmem>>, vector<1x16xf32>
    %cst_14 = arith.constant dense<0.000000e+00> : vector<1x16xf32>
    %17 = tpu.matmul %16, %15, %cst_14 {dimension_numbers = #tpu.dot_dimension_numbers<[1], [0], [0], [1], [0, 0, 1, 1], [], []>} : vector<1x16xf32>, vector<16x16xf32>, vector<1x16xf32> -> vector<1x16xf32>
    %c0_15 = arith.constant 0 : index
    %18 = memref.load %arg7[%c0_15] : memref<1xf32, #tpu.memory_space<smem>>
    %19 = vector.broadcast %18 : f32 to vector<1x16xf32>
    %20 = arith.addf %17, %19 : vector<1x16xf32>
    %c0_16 = arith.constant 0 : index
    %c0_17 = arith.constant 0 : index
    %c0_18 = arith.constant 0 : index
    %21 = vector.load %arg8[%c0_16, %c0_17, %c0_18] : memref<1x1x16xf32, #tpu.memory_space<vmem>>, vector<1x1x16xf32>
    %22 = vector.shape_cast %21 : vector<1x1x16xf32> to vector<1x16xf32>
    %23 = vector.shape_cast %20 : vector<1x16xf32> to vector<1x1x16xf32>
    tpu.vector_store %arg8[%c0_16, %c0_17, %c0_18], %23 {strides = array<i32>} : memref<1x1x16xf32, #tpu.memory_space<vmem>>, vector<1x1x16xf32>,
    return
  }
  func.func @transform_0(%arg0: i32) -> (i32, i32) {
    %c0_i32 = arith.constant 0 : i32
    %c0_i32_0 = arith.constant 0 : i32
    return %arg0, %c0_i32 : i32, i32
  }
  func.func @transform_1(%arg0: i32) -> (i32, i32) {
    %c0_i32 = arith.constant 0 : i32
    %c0_i32_0 = arith.constant 0 : i32
    %c0_i32_1 = arith.constant 0 : i32
    return %c0_i32, %c0_i32_0 : i32, i32
  }
  func.func @transform_2(%arg0: i32) -> (i32, i32) {
    %c0_i32 = arith.constant 0 : i32
    %c0_i32_0 = arith.constant 0 : i32
    %c0_i32_1 = arith.constant 0 : i32
    return %c0_i32, %c0_i32_0 : i32, i32
  }
  func.func @transform_3(%arg0: i32) -> (i32, i32) {
    %c0_i32 = arith.constant 0 : i32
    %c0_i32_0 = arith.constant 0 : i32
    %c0_i32_1 = arith.constant 0 : i32
    return %c0_i32, %c0_i32_0 : i32, i32
  }
  func.func @transform_4(%arg0: i32) -> (i32, i32) {
    %c0_i32 = arith.constant 0 : i32
    %c0_i32_0 = arith.constant 0 : i32
    %c0_i32_1 = arith.constant 0 : i32
    return %c0_i32, %c0_i32_0 : i32, i32
  }
  func.func @transform_5(%arg0: i32) -> (i32, i32) {
    %c0_i32 = arith.constant 0 : i32
    %c0_i32_0 = arith.constant 0 : i32
    %c0_i32_1 = arith.constant 0 : i32
    return %c0_i32, %c0_i32_0 : i32, i32
  }
  func.func @transform_6(%arg0: i32) -> i32 {
    %c0_i32 = arith.constant 0 : i32
    %c0_i32_0 = arith.constant 0 : i32
    return %c0_i32 : i32
  }
  func.func @transform_7(%arg0: i32) -> (i32, i32, i32) {
    %c0_i32 = arith.constant 0 : i32
    %c0_i32_0 = arith.constant 0 : i32
    %c0_i32_1 = arith.constant 0 : i32
    return %arg0, %c0_i32, %c0_i32_0 : i32, i32, i32
  }
}

</mosaic_0001>

<llo_original>
// kernel: tpu_custom_call.1
$region0: #{tpu_custom_call.1}
  #allocation0 [shape = 'u32[]', space=smem, size = 0x4, offset = 0x4, fixed_abs, tag = 'smem constant byte address 0x4 - core index']
  #allocation1 [shape = 'u32[144,128]{1,0:T(1,128)}', space=vmem, size = 0x12000, scoped, tag = 'internal scratch']
  #allocation2 [shape = 'f32[1]{0:T(128)S(6)}', space=smem, size = 0x200, scoped, tag = 'scoped memory for tpu_custom_call.1']
  %s0 = inlined_call_operand.vmem [shape: f32[16,32], index: 0, kind: input, shape index: {}]
  %s1 = inlined_call_operand.vmem [shape: f32[32,32], index: 1, kind: input, shape index: {}]
  %s2 = inlined_call_operand.vmem [shape: f32[32,1], index: 2, kind: input, shape index: {}]
  %s3 = inlined_call_operand.hbm [shape: f32[16,32], index: 3, kind: input, shape index: {}]
  %s4 = inlined_call_operand.vmem [shape: f32[16,1], index: 4, kind: input, shape index: {}]
  %s5 = inlined_call_operand.vmem [shape: f32[1,16], index: 5, kind: input, shape index: {}]
  %s6 = inlined_call_operand.<no memory space> [shape: f32[1], index: 6, kind: input, shape index: {}]
  %s7 = inlined_call_operand.hbm [shape: f32[1,1,16], index: 7, kind: output, shape index: {}]
  %s8 = sld [smem:[#allocation0]]
  $region42: #{tpu_custom_call.1} parent=0
    _
  %s10 = ssub.s32 1, %s8
  %s11 = scalar_select 0, %s10, %s8
  %12 = sst [smem:[#allocation2]] %s6
  $region1: #{tpu_custom_call.1} parent=0
    #allocation3 [shape = 'u8[8192]{0}', space=vmem, size = 0x2000, scoped, tag = 'input window, operand 3, single buffered']
    #allocation4 [shape = 's32[1]{0}', space=sflag, size = 0x4, scoped, tag = 'scoped memory for tpu_custom_call.1']
    #allocation5 [shape = 's32[1]{0}', space=sflag, size = 0x4, scoped, tag = 'scoped memory for tpu_custom_call.1']
    #allocation6 [shape = 'u8[512]{0}', space=vmem, size = 0x400, scoped, tag = 'output window, operand 0, single buffered']
    %13 = vsyncpa [#allocation4], 0
    %14 = vsyncpa [#allocation5], 0
    // Predicated region
    $region2: #{tpu_custom_call.1} parent=1 // pred_check
      _
    $region3: #{tpu_custom_call.1} parent=1 // pred_check_branch
      %16 = sbr.rel (0) target = $region5
    $region4: #{tpu_custom_call.1} parent=1 // pred_region
      _
    $region5: #{tpu_custom_call.1} parent=1 // pred_fallthru
      _
    // Predicated region
    $region6: #{tpu_custom_call.1} parent=1 // pred_check
      _
    $region7: #{tpu_custom_call.1} parent=1 // pred_check_branch
      %18 = sbr.rel (0) target = $region9
    $region8: #{tpu_custom_call.1} parent=1 // pred_region
      _
    $region9: #{tpu_custom_call.1} parent=1 // pred_fallthru
      _
    // Predicated region
    $region10: #{tpu_custom_call.1} parent=1 // pred_check
      _
    $region11: #{tpu_custom_call.1} parent=1 // pred_check_branch
      %20 = sbr.rel (0) target = $region13
    $region12: #{tpu_custom_call.1} parent=1 // pred_region
      _
    $region13: #{tpu_custom_call.1} parent=1 // pred_fallthru
      _
    // Predicated region
    $region14: #{tpu_custom_call.1} parent=1 // pred_check
      _
    $region15: #{tpu_custom_call.1} parent=1 // pred_check_branch
      %22 = sbr.rel (0) target = $region17
    $region16: #{tpu_custom_call.1} parent=1 // pred_region
      %s24 = ssub.s32 256, 256
      %25 = vsyncadd [#allocation4], %s24
      %s26 = sshll.u32 [#allocation3], 4
      %s27 = int_to_ptr.vmem [resolvable:$true] %s26
      %32 = dma.hbm_to_vmem [thread:$0]  %s3, 256, %s27, [#allocation4], 128, 128, 8
    $region17: #{tpu_custom_call.1} parent=1 // pred_fallthru
      _
    // Predicated region
    $region18: #{tpu_custom_call.1} parent=1 // pred_check
      _
    $region19: #{tpu_custom_call.1} parent=1 // pred_check_branch
      %34 = sbr.rel (0) target = $region21
    $region20: #{tpu_custom_call.1} parent=1 // pred_region
      _
    $region21: #{tpu_custom_call.1} parent=1 // pred_fallthru
      _
    // Predicated region
    $region22: #{tpu_custom_call.1} parent=1 // pred_check
      _
    $region23: #{tpu_custom_call.1} parent=1 // pred_check_branch
      %36 = sbr.rel (0) target = $region25
    $region24: #{tpu_custom_call.1} parent=1 // pred_region
      _
    $region25: #{tpu_custom_call.1} parent=1 // pred_fallthru
      _
    // Predicated region
    $region26: #{tpu_custom_call.1} parent=1 // pred_check
      _
    $region27: #{tpu_custom_call.1} parent=1 // pred_check_branch
      %38 = sbr.rel (0) target = $region29
    $region28: #{tpu_custom_call.1} parent=1 // pred_region
      _
    $region29: #{tpu_custom_call.1} parent=1 // pred_fallthru
      _
    // Predicated region
    $region30: #{tpu_custom_call.1} parent=1 // pred_check
      _
    $region31: #{tpu_custom_call.1} parent=1 // pred_check_branch
      %40 = sbr.rel (0) target = $region33
    $region32: #{tpu_custom_call.1} parent=1 // pred_region
      %41 = dma.done [#allocation4], 256
    $region33: #{tpu_custom_call.1} parent=1 // pred_fallthru
      _
    %v42 = vld [vmem:[%s0] sm:$0xff]
    %v43 = vld [vmem:[%s0 + $0x8] sm:$0xff]
    %v44 = vld [vmem:[%s1] sm:$0xff]
    %v45 = vld [vmem:[%s1 + $0x8] sm:$0xff]
    %v46 = vld [vmem:[%s1 + $0x10] sm:$0xff]
    %v47 = vld [vmem:[%s1 + $0x18] sm:$0xff]
    %v48 = vld [vmem:[%s2] sm:$0xff]
    %v49 = vld [vmem:[%s2 + $0x8] sm:$0xff]
    %v50 = vld [vmem:[%s2 + $0x10] sm:$0xff]
    %v51 = vld [vmem:[%s2 + $0x18] sm:$0xff]
    %53 = vset.pattern.permute.xlu0 0
    %54 = vperm.xlu0 %53, %v48
    %v55 = vpop.permute.xlu0 %54
    %58 = vset.pattern.permute.xlu0 0
    %59 = vperm.xlu0 %58, %v49
    %v60 = vpop.permute.xlu0 %59
    %63 = vset.pattern.permute.xlu0 0
    %64 = vperm.xlu0 %63, %v50
    %v65 = vpop.permute.xlu0 %64
    %68 = vset.pattern.permute.xlu0 0
    %69 = vperm.xlu0 %68, %v51
    %v70 = vpop.permute.xlu0 %69
    %vm72 = vcmask 261120
    %v74 = vsel %vm72, %v44, 0
    %v77 = vsel %vm72, %v45, 0
    %v80 = vsel %vm72, %v46, 0
    %v83 = vsel %vm72, %v47, 0
    %v86 = vsel %vm72, %v42, 0
    %v89 = vsel %vm72, %v43, 0
    %91 = vmatprep.subr.mxu0 0.0
    %92 = vmatpush1.xpose.msra.mxu0 0.0
    %93 = vmatprep.subr.mxu0 0.0
    %94 = vmatpush1.xpose.msra.mxu0 0.0
    %95 = vmatprep.subr.mxu0 0.0
    %96 = vmatpush1.xpose.msra.mxu0 0.0
    %97 = vmatprep.subr.mxu0 0.0
    %98 = vmatpush1.xpose.msra.mxu0 0.0
    %99 = vmatprep.subr.mxu0 0.0
    %100 = vmatpush1.xpose.msra.mxu0 0.0
    %101 = vmatprep.subr.mxu0 0.0
    %102 = vmatpush1.xpose.msra.mxu0 0.0
    %103 = vmatprep.subr.mxu0 0.0
    %104 = vmatpush1.xpose.msra.mxu0 0.0
    %105 = vmatprep.subr.mxu0 0.0
    %106 = vmatpush1.xpose.msra.mxu0 0.0
    %107 = vmatprep.subr.mxu0 0.0
    %108 = vmatpush1.xpose.msra.mxu0 0.0
    %109 = vmatprep.subr.mxu0 0.0
    %110 = vmatpush1.xpose.msra.mxu0 0.0
    %111 = vmatprep.subr.mxu0 0.0
    %112 = vmatpush1.xpose.msra.mxu0 0.0
    %113 = vmatprep.subr.mxu0 0.0
    %114 = vmatpush1.xpose.msra.mxu0 0.0
    %115 = vmatprep.subr.mxu0 0.0
    %116 = vmatpush1.xpose.msra.mxu0 0.0
    %117 = vmatprep.subr.mxu0 0.0
    %118 = vmatpush1.xpose.msra.mxu0 0.0
    %119 = vmatprep.subr.mxu0 0.0
    %120 = vmatpush1.xpose.msra.mxu0 %v89
    %121 = vmatprep.subr.mxu0 0.0
    %122 = vmatpush1.xpose.msra.mxu0 %v86
    %123 = vmatprep.subr.mxu0 0.0
    %124 = vmatpush2.xpose.msra.mxu0 0.0
    %125 = vmatprep.subr.mxu0 0.0
    %126 = vmatpush2.xpose.msra.mxu0 0.0
    %127 = vmatprep.subr.mxu0 0.0
    %128 = vmatpush2.xpose.msra.mxu0 0.0
    %129 = vmatprep.subr.mxu0 0.0
    %130 = vmatpush2.xpose.msra.mxu0 0.0
    %131 = vmatprep.subr.mxu0 0.0
    %132 = vmatpush2.xpose.msra.mxu0 0.0
    %133 = vmatprep.subr.mxu0 0.0
    %134 = vmatpush2.xpose.msra.mxu0 0.0
    %135 = vmatprep.subr.mxu0 0.0
    %136 = vmatpush2.xpose.msra.mxu0 0.0
    %137 = vmatprep.subr.mxu0 0.0
    %138 = vmatpush2.xpose.msra.mxu0 0.0
    %139 = vmatprep.subr.mxu0 0.0
    %140 = vmatpush2.xpose.msra.mxu0 0.0
    %141 = vmatprep.subr.mxu0 0.0
    %142 = vmatpush2.xpose.msra.mxu0 0.0
    %143 = vmatprep.subr.mxu0 0.0
    %144 = vmatpush2.xpose.msra.mxu0 0.0
    %145 = vmatprep.subr.mxu0 0.0
    %146 = vmatpush2.xpose.msra.mxu0 0.0
    %147 = vmatprep.subr.mxu0 0.0
    %148 = vmatpush2.xpose.msra.mxu0 0.0
    %149 = vmatprep.subr.mxu0 0.0
    %150 = vmatpush2.xpose.msra.mxu0 0.0
    %151 = vmatprep.subr.mxu0 0.0
    %152 = vmatpush2.xpose.msra.mxu0 0.0
    %153 = vmatprep.subr.mxu0 0.0
    %154 = vmatpush2.xpose.msra.mxu0 0.0
    %155 = vmatprep.mubr.f32.mxu0 0.0
    %156 = vmatmul.mubr.f32.gmra.mxu0 %v74
    %v157 = vpop.f32.mrf.mxu0
    %v158 = vadd.f32 %v55, %v157
    %v159 = vpop.f32.mrf.mxu0
    %160 = vmatprep.mubr.f32.mxu0 0.0
    %161 = vmatmul.mubr.f32.gmra.mxu0 %v77
    %v162 = vpop.f32.mrf.mxu0
    %v163 = vadd.f32 %v60, %v162
    %v164 = vpop.f32.mrf.mxu0
    %165 = vmatprep.mubr.f32.mxu0 0.0
    %166 = vmatmul.mubr.f32.gmra.mxu0 %v80
    %v167 = vpop.f32.mrf.mxu0
    %v168 = vadd.f32 %v65, %v167
    %v169 = vpop.f32.mrf.mxu0
    %170 = vmatprep.mubr.f32.mxu0 0.0
    %171 = vmatmul.mubr.f32.gmra.mxu0 %v83
    %v172 = vpop.f32.mrf.mxu0
    %v173 = vadd.f32 %v70, %v172
    %v174 = vpop.f32.mrf.mxu0
    %175 = vdwg.mxu0
    %v176 = vmax.f32 %v158, 0.0
    %v177 = vmax.f32 %v163, 0.0
    %v178 = vmax.f32 %v168, 0.0
    %v179 = vmax.f32 %v173, 0.0
    %v180 = vld [vmem:[#allocation3] sm:$0xff]
    %v181 = vld [vmem:[#allocation3 + $0x8] sm:$0xff]
    %v182 = vld [vmem:[%s4] sm:$0xff]
    %v183 = vld [vmem:[%s4 + $0x8] sm:$0xff]
    %185 = vset.pattern.permute.xlu0 0
    %186 = vperm.xlu0 %185, %v182
    %v187 = vpop.permute.xlu0 %186
    %190 = vset.pattern.permute.xlu0 0
    %191 = vperm.xlu0 %190, %v183
    %v192 = vpop.permute.xlu0 %191
    %v195 = vsel %vm72, %v180, 0
    %v198 = vsel %vm72, %v181, 0
    %200 = vmatprep.subr.mxu0 0.0
    %201 = vmatpush1.msra.mxu0 0.0
    %202 = vmatprep.subr.mxu0 0.0
    %203 = vmatpush1.msra.mxu0 0.0
    %204 = vmatprep.subr.mxu0 0.0
    %205 = vmatpush1.msra.mxu0 0.0
    %206 = vmatprep.subr.mxu0 0.0
    %207 = vmatpush1.msra.mxu0 0.0
    %208 = vmatprep.subr.mxu0 0.0
    %209 = vmatpush1.msra.mxu0 0.0
    %210 = vmatprep.subr.mxu0 0.0
    %211 = vmatpush1.msra.mxu0 0.0
    %212 = vmatprep.subr.mxu0 0.0
    %213 = vmatpush1.msra.mxu0 0.0
    %214 = vmatprep.subr.mxu0 0.0
    %215 = vmatpush1.msra.mxu0 0.0
    %216 = vmatprep.subr.mxu0 0.0
    %217 = vmatpush1.msra.mxu0 0.0
    %218 = vmatprep.subr.mxu0 0.0
    %219 = vmatpush1.msra.mxu0 0.0
    %220 = vmatprep.subr.mxu0 0.0
    %221 = vmatpush1.msra.mxu0 0.0
    %222 = vmatprep.subr.mxu0 0.0
    %223 = vmatpush1.msra.mxu0 0.0
    %224 = vmatprep.subr.mxu0 0.0
    %225 = vmatpush1.msra.mxu0 %v179
    %226 = vmatprep.subr.mxu0 0.0
    %227 = vmatpush1.msra.mxu0 %v178
    %228 = vmatprep.subr.mxu0 0.0
    %229 = vmatpush1.msra.mxu0 %v177
    %230 = vmatprep.subr.mxu0 0.0
    %231 = vmatpush1.msra.mxu0 %v176
    %232 = vmatprep.subr.mxu0 0.0
    %233 = vmatpush2.msra.mxu0 0.0
    %234 = vmatprep.subr.mxu0 0.0
    %235 = vmatpush2.msra.mxu0 0.0
    %236 = vmatprep.subr.mxu0 0.0
    %237 = vmatpush2.msra.mxu0 0.0
    %238 = vmatprep.subr.mxu0 0.0
    %239 = vmatpush2.msra.mxu0 0.0
    %240 = vmatprep.subr.mxu0 0.0
    %241 = vmatpush2.msra.mxu0 0.0
    %242 = vmatprep.subr.mxu0 0.0
    %243 = vmatpush2.msra.mxu0 0.0
    %244 = vmatprep.subr.mxu0 0.0
    %245 = vmatpush2.msra.mxu0 0.0
    %246 = vmatprep.subr.mxu0 0.0
    %247 = vmatpush2.msra.mxu0 0.0
    %248 = vmatprep.subr.mxu0 0.0
    %249 = vmatpush2.msra.mxu0 0.0
    %250 = vmatprep.subr.mxu0 0.0
    %251 = vmatpush2.msra.mxu0 0.0
    %252 = vmatprep.subr.mxu0 0.0
    %253 = vmatpush2.msra.mxu0 0.0
    %254 = vmatprep.subr.mxu0 0.0
    %255 = vmatpush2.msra.mxu0 0.0
    %256 = vmatprep.subr.mxu0 0.0
    %257 = vmatpush2.msra.mxu0 0.0
    %258 = vmatprep.subr.mxu0 0.0
    %259 = vmatpush2.msra.mxu0 0.0
    %260 = vmatprep.subr.mxu0 0.0
    %261 = vmatpush2.msra.mxu0 0.0
    %262 = vmatprep.subr.mxu0 0.0
    %263 = vmatpush2.msra.mxu0 0.0
    %264 = vmatprep.mubr.f32.mxu0 0.0
    %265 = vmatmul.mubr.f32.gmra.mxu0 %v195
    %v266 = vpop.f32.mrf.mxu0
    %v267 = vadd.f32 %v187, %v266
    %v268 = vpop.f32.mrf.mxu0
    %269 = vmatprep.mubr.f32.mxu0 0.0
    %270 = vmatmul.mubr.f32.gmra.mxu0 %v198
    %v271 = vpop.f32.mrf.mxu0
    %v272 = vadd.f32 %v192, %v271
    %v273 = vpop.f32.mrf.mxu0
    %274 = vdwg.mxu0
    %v275 = vmax.f32 %v267, 0.0
    %v276 = vmax.f32 %v272, 0.0
    %v277 = vld [vmem:[%s5] sm:$0x1]
    %s278 = sld [smem:[#allocation2]]
    %v279 = vstv %s278
    %vm280 = vcmask 130048
    %v282 = vsel %vm280, %v277, 0
    %284 = vmatprep.subr.mxu0 0.0
    %285 = vmatpush1.msra.mxu0 0.0
    %286 = vmatprep.subr.mxu0 0.0
    %287 = vmatpush1.msra.mxu0 0.0
    %288 = vmatprep.subr.mxu0 0.0
    %289 = vmatpush1.msra.mxu0 0.0
    %290 = vmatprep.subr.mxu0 0.0
    %291 = vmatpush1.msra.mxu0 0.0
    %292 = vmatprep.subr.mxu0 0.0
    %293 = vmatpush1.msra.mxu0 0.0
    %294 = vmatprep.subr.mxu0 0.0
    %295 = vmatpush1.msra.mxu0 0.0
    %296 = vmatprep.subr.mxu0 0.0
    %297 = vmatpush1.msra.mxu0 0.0
    %298 = vmatprep.subr.mxu0 0.0
    %299 = vmatpush1.msra.mxu0 0.0
    %300 = vmatprep.subr.mxu0 0.0
    %301 = vmatpush1.msra.mxu0 0.0
    %302 = vmatprep.subr.mxu0 0.0
    %303 = vmatpush1.msra.mxu0 0.0
    %304 = vmatprep.subr.mxu0 0.0
    %305 = vmatpush1.msra.mxu0 0.0
    %306 = vmatprep.subr.mxu0 0.0
    %307 = vmatpush1.msra.mxu0 0.0
    %308 = vmatprep.subr.mxu0 0.0
    %309 = vmatpush1.msra.mxu0 0.0
    %310 = vmatprep.subr.mxu0 0.0
    %311 = vmatpush1.msra.mxu0 0.0
    %312 = vmatprep.subr.mxu0 0.0
    %313 = vmatpush1.msra.mxu0 %v276
    %314 = vmatprep.subr.mxu0 0.0
    %315 = vmatpush1.msra.mxu0 %v275
    %316 = vmatprep.subr.mxu0 0.0
    %317 = vmatpush2.msra.mxu0 0.0
    %318 = vmatprep.subr.mxu0 0.0
    %319 = vmatpush2.msra.mxu0 0.0
    %320 = vmatprep.subr.mxu0 0.0
    %321 = vmatpush2.msra.mxu0 0.0
    %322 = vmatprep.subr.mxu0 0.0
    %323 = vmatpush2.msra.mxu0 0.0
    %324 = vmatprep.subr.mxu0 0.0
    %325 = vmatpush2.msra.mxu0 0.0
    %326 = vmatprep.subr.mxu0 0.0
    %327 = vmatpush2.msra.mxu0 0.0
    %328 = vmatprep.subr.mxu0 0.0
    %329 = vmatpush2.msra.mxu0 0.0
    %330 = vmatprep.subr.mxu0 0.0
    %331 = vmatpush2.msra.mxu0 0.0
    %332 = vmatprep.subr.mxu0 0.0
    %333 = vmatpush2.msra.mxu0 0.0
    %334 = vmatprep.subr.mxu0 0.0
    %335 = vmatpush2.msra.mxu0 0.0
    %336 = vmatprep.subr.mxu0 0.0
    %337 = vmatpush2.msra.mxu0 0.0
    %338 = vmatprep.subr.mxu0 0.0
    %339 = vmatpush2.msra.mxu0 0.0
    %340 = vmatprep.subr.mxu0 0.0
    %341 = vmatpush2.msra.mxu0 0.0
    %342 = vmatprep.subr.mxu0 0.0
    %343 = vmatpush2.msra.mxu0 0.0
    %344 = vmatprep.subr.mxu0 0.0
    %345 = vmatpush2.msra.mxu0 0.0
    %346 = vmatprep.subr.mxu0 0.0
    %347 = vmatpush2.msra.mxu0 0.0
    %348 = vmatprep.mubr.f32.mxu0 0.0
    %349 = vmatmul.mubr.f32.gmra.mxu0 %v282
    %v350 = vpop.f32.mrf.mxu0
    %v351 = vadd.f32 %v279, %v350
    %v352 = vpop.f32.mrf.mxu0
    %353 = vdwg.mxu0
    %vm354 = vcmask 122880
    %355 = vst.msk [vmem:[#allocation6] sm:$0x1] %vm354, %v351
    // Predicated region
    $region34: #{tpu_custom_call.1} parent=1 // pred_check
      _
    $region35: #{tpu_custom_call.1} parent=1 // pred_check_branch
      %357 = sbr.rel (0) target = $region37
    $region36: #{tpu_custom_call.1} parent=1 // pred_region
      %s359 = ssub.s32 16, 16
      %360 = vsyncadd [#allocation5], %s359
      %s362 = sshll.u32 [#allocation6], 4
      %s363 = int_to_ptr.vmem [resolvable:$true] %s362
      %365 = dma.vmem_to_hbm [thread:$0]  %s363, 16, %s7, [#allocation5]
    $region37: #{tpu_custom_call.1} parent=1 // pred_fallthru
      _
    // Predicated region
    $region38: #{tpu_custom_call.1} parent=1 // pred_check
      _
    $region39: #{tpu_custom_call.1} parent=1 // pred_check_branch
      %367 = sbr.rel (0) target = $region41
    $region40: #{tpu_custom_call.1} parent=1 // pred_region
      %368 = dma.done [#allocation5], 16
    $region41: #{tpu_custom_call.1} parent=1 // pred_fallthru
      _
    %369 = vsyncpa [#allocation4], 1
    %370 = vsyncpa [#allocation5], 1

</llo_original>
